<compile_context>
chip_gen: v7x
topology: tpu7x:2x2x1
jax: 0.10.0
libtpu: 0.0.40
codegen_flags: <defaults>
</compile_context>

<pallas_src>
import jax
import jax.numpy as jnp
from jax import lax
from jax.experimental import pallas as pl
from jax.experimental.pallas import tpu as pltpu

_EPS = 1e-5  # nn.InstanceNorm1d default eps


def _round_up(x, m):
    return (x + m - 1) // m * m


def _readout_kernel(emb_ref, nb_ref, w_ref, b_ref, o_ref):
    # emb_ref : (tb, N, F)   nb_ref : (tb, 1)   w_ref : (1, F)   b_ref : (1, 1)
    # o_ref   : (tb, 1)
    inv_f = 1.0 / emb_ref.shape[-1]

    # ---- pooling: mean over nodes (f32 accumulation, no upcast copy) ------
    pooled = jnp.sum(emb_ref[...], axis=1, dtype=jnp.float32) / nb_ref[...]   # (tb, F)

    # ---- InstanceNorm1d(1): per-row normalization over F (biased var) -----
    mean = jnp.sum(pooled, axis=-1, keepdims=True) * inv_f                    # (tb, 1)
    centered = pooled - mean
    var = jnp.sum(centered * centered, axis=-1, keepdims=True) * inv_f
    xn = centered * lax.rsqrt(var + _EPS)                                     # (tb, F)

    # ---- Linear(fmaps, 1) + sigmoid ---------------------------------------
    y = jnp.sum(xn * w_ref[...].astype(jnp.float32), axis=-1, keepdims=True) \
        + b_ref[...]                                                          # (tb, 1)
    o_ref[...] = (1.0 / (1.0 + jnp.exp(-y))).astype(o_ref.dtype)


def _vmem_capacity_bytes():
    try:
        return int(pltpu.get_tpu_info().vmem_capacity_bytes)
    except Exception:
        return 64 << 20  # conservative default: v7x per-TensorCore VMEM


def readout_pallas(emb_in, batch_nb_nodes, w_row, bias):
    """emb_in: (B, N, F).  batch_nb_nodes: (B,).  w_row: (1, F).  bias: (1, 1).

    Returns (B,) f32 = sigmoid(Linear(InstanceNorm(mean_pool(emb_in)))).
    """
    B, N, F = emb_in.shape
    itemsize = emb_in.dtype.itemsize

    # ---- generation-aware VMEM budgeting (layout-padded footprints) -------
    cap = _vmem_capacity_bytes()
    if cap <= (64 << 20):            # v7x-class: 64 MiB per TensorCore
        emb_budget = 28 << 20        # total budget for tile-related VMEM
        limit_cap = 52 << 20         # leave headroom under the 64 MiB ceiling
    else:                            # v5e / v6e: 128 MiB physical VMEM
        emb_budget = 48 << 20
        limit_cap = 100 << 20

    sub = max(8, 32 // max(itemsize, 1))                 # sublane packing (f32:8, bf16:16)
    f_pad = _round_up(F, 128)                            # lane padding
    tile_row = _round_up(N, sub) * f_pad * itemsize      # one layout-padded (N, F) slice
    upcast_row = 0 if emb_in.dtype == jnp.float32 else _round_up(N, 8) * f_pad * 4
    inter_row = 8 * f_pad * 4                            # f32 intermediates per batch row
    per_row = 2 * tile_row + upcast_row + inter_row      # emb tile is double-buffered

    # TODO(synk): if a single 8-row tile exceeds the budget (huge N*F), tile
    # over the node axis as well; not needed for typical graph sizes.
    tb = max(8, (emb_budget // per_row) // 8 * 8)
    tb = min(tb, _round_up(B, 8))                        # never larger than the batch
    num_tiles = pl.cdiv(B, tb)
    Bp = num_tiles * tb                                  # only tiny nb/out arrays use Bp

    vmem_need = tb * per_row + (2 << 20)
    vmem_limit = int(min(max(vmem_need, 16 << 20), limit_cap))

    # Pad only the tiny per-graph node-count vector so its blocks are full.
    nb = jnp.asarray(batch_nb_nodes, jnp.float32)
    if Bp != B:
        nb = jnp.pad(nb, (0, Bp - B), constant_values=1.0)
    nb = nb.reshape(Bp, 1)

    cost = pl.CostEstimate(
        flops=int(2 * Bp * N * F + 10 * Bp * F),
        transcendentals=int(2 * Bp),
        bytes_accessed=int(Bp * N * F * itemsize + Bp * 4 + F * 4 + 4 + Bp * 4),
    )

    out = pl.pallas_call(
        _readout_kernel,
        out_shape=jax.ShapeDtypeStruct((Bp, 1), jnp.float32),
        grid_spec=pltpu.PrefetchScalarGridSpec(
            num_scalar_prefetch=0,
            grid=(num_tiles,),
            in_specs=[
                # emb tile: ragged last tile is masked by Pallas (no pad copy).
                pl.BlockSpec((tb, N, F), lambda i: (i, 0, 0)),
                pl.BlockSpec((tb, 1), lambda i: (i, 0)),        # nb_nodes tile
                pl.BlockSpec((1, F), lambda i: (0, 0)),         # fcl weight (VMEM-resident)
                pl.BlockSpec((1, 1), lambda i: (0, 0)),         # fcl bias   (VMEM-resident)
            ],
            out_specs=pl.BlockSpec((tb, 1), lambda i: (i, 0)),
        ),
        compiler_params=pltpu.CompilerParams(
            dimension_semantics=("parallel",),   # batch tiles independent -> megacore
            vmem_limit_bytes=vmem_limit,
        ),
        cost_estimate=cost,
    )(emb_in, nb, w_row, bias)
    return out[:B, 0]


class ReadoutPallas:
    """Mirror of the PyTorch Readout module (pool + norm + fcl + sigmoid in Pallas)."""

    def __init__(self, fmaps, key):
        kw, kb = jax.random.split(key, 2)
        bound = 1.0 / (fmaps ** 0.5)
        # nn.Linear(fmaps, 1): weight (1, fmaps), bias (1,)
        self.w = jax.random.uniform(kw, (1, fmaps), jnp.float32, -bound, bound)
        self.b = jax.random.uniform(kb, (1, 1), jnp.float32, -bound, bound)
        self.fmaps = fmaps

    def __call__(self, emb_in, adj_mask, batch_nb_nodes):
        # adj_mask unused: base-class _pooling is abstract (see TODO at top of file).
        del adj_mask
        return readout_pallas(emb_in, batch_nb_nodes, self.w, self.b)


def _readout_ref(emb_in, batch_nb_nodes, w, b):
    pooled = emb_in.astype(jnp.float32).sum(axis=1) / batch_nb_nodes[:, None]
    mean = pooled.mean(axis=-1, keepdims=True)
    var = ((pooled - mean) ** 2).mean(axis=-1, keepdims=True)
    xn = (pooled - mean) / jnp.sqrt(var + _EPS)
    y = xn @ w[0] + b[0, 0]
    return jax.nn.sigmoid(y)


if __name__ == "__main__":
    key = jax.random.PRNGKey(0)
    k_model, k_x, k_adj = jax.random.split(key, 3)

    batch, nodes, fmaps = 2, 8, 32
    emb_in = jax.random.normal(k_x, (batch, nodes, fmaps), jnp.float32)
    emb_in = emb_in.at[1, 6:].set(0.0)  # second graph has only 6 real nodes
    adj_mask = (jax.random.uniform(k_adj, (batch, nodes, nodes)) > 0.5).astype(jnp.float32)
    batch_nb_nodes = jnp.array([nodes, nodes - 2], jnp.float32)

    model = ReadoutPallas(fmaps, k_model)
    out = model(emb_in, adj_mask, batch_nb_nodes)
    out = jax.block_until_ready(out)

    ref = _readout_ref(emb_in, batch_nb_nodes, model.w, model.b)
    assert out.shape == (batch,)
    assert jnp.allclose(out, ref, atol=1e-5, rtol=1e-5), (out, ref)

    print("KERNEL_OK")
</pallas_src>

<mosaic_0001>
module attributes {stable_mosaic.version = 11 : i64} {
  func.func @_readout_kernel(%arg0: i32, %arg1: memref<8x8x32xf32, #tpu.memory_space<vmem>>, %arg2: memref<8x1xf32, #tpu.memory_space<vmem>>, %arg3: memref<1x32xf32, #tpu.memory_space<vmem>>, %arg4: memref<1x1xf32, #tpu.memory_space<vmem>>, %arg5: memref<8x1xf32, #tpu.memory_space<vmem>>) attributes {dimension_semantics = [#tpu.dimension_semantics<parallel>], iteration_bounds = array<i64: 1>, scalar_prefetch = 0 : i64, scratch_operands = 0 : i64, tpu.core_type = #tpu.core_type<tc>, window_params = [{transform_indices = @transform_0, window_bounds = array<i64: 8, 8, 32>}, {transform_indices = @transform_1, window_bounds = array<i64: 8, 1>}, {pipeline_mode = #tpu.pipeline_mode<synchronous>, transform_indices = @transform_2, window_bounds = array<i64: 1, 32>}, {pipeline_mode = #tpu.pipeline_mode<synchronous>, transform_indices = @transform_3, window_bounds = array<i64: 1, 1>}, {transform_indices = @transform_4, window_bounds = array<i64: 8, 1>}]} {
    %c0 = arith.constant 0 : index
    %c0_0 = arith.constant 0 : index
    %c0_1 = arith.constant 0 : index
    %0 = vector.load %arg1[%c0, %c0_0, %c0_1] : memref<8x8x32xf32, #tpu.memory_space<vmem>>, vector<8x8x32xf32>
    %cst = arith.constant dense<0.000000e+00> : vector<8x32xf32>
    %1 = vector.multi_reduction <add>, %0, %cst [1] : vector<8x8x32xf32> to vector<8x32xf32>
    %c0_2 = arith.constant 0 : index
    %c0_3 = arith.constant 0 : index
    %2 = vector.load %arg2[%c0_2, %c0_3] : memref<8x1xf32, #tpu.memory_space<vmem>>, vector<8x1xf32>
    %3 = vector.broadcast %2 : vector<8x1xf32> to vector<8x32xf32>
    %4 = arith.divf %1, %3 : vector<8x32xf32>
    %cst_4 = arith.constant dense<0.000000e+00> : vector<8xf32>
    %5 = vector.multi_reduction <add>, %4, %cst_4 [1] : vector<8x32xf32> to vector<8xf32>
    %6 = vector.shape_cast %5 : vector<8xf32> to vector<8x1xf32>
    %cst_5 = arith.constant 3.125000e-02 : f32
    %7 = vector.broadcast %cst_5 : f32 to vector<8x1xf32>
    %8 = arith.mulf %6, %7 : vector<8x1xf32>
    %9 = vector.broadcast %8 : vector<8x1xf32> to vector<8x32xf32>
    %10 = arith.subf %4, %9 : vector<8x32xf32>
    %11 = arith.mulf %10, %10 : vector<8x32xf32>
    %cst_6 = arith.constant dense<0.000000e+00> : vector<8xf32>
    %12 = vector.multi_reduction <add>, %11, %cst_6 [1] : vector<8x32xf32> to vector<8xf32>
    %13 = vector.shape_cast %12 : vector<8xf32> to vector<8x1xf32>
    %cst_7 = arith.constant 3.125000e-02 : f32
    %14 = vector.broadcast %cst_7 : f32 to vector<8x1xf32>
    %15 = arith.mulf %13, %14 : vector<8x1xf32>
    %cst_8 = arith.constant 9.99999974E-6 : f32
    %16 = vector.broadcast %cst_8 : f32 to vector<8x1xf32>
    %17 = arith.addf %15, %16 : vector<8x1xf32>
    %18 = math.rsqrt %17 : vector<8x1xf32>
    %19 = vector.broadcast %18 : vector<8x1xf32> to vector<8x32xf32>
    %20 = arith.mulf %10, %19 : vector<8x32xf32>
    %c0_9 = arith.constant 0 : index
    %c0_10 = arith.constant 0 : index
    %21 = vector.load %arg3[%c0_9, %c0_10] : memref<1x32xf32, #tpu.memory_space<vmem>>, vector<1x32xf32>
    %22 = vector.broadcast %21 : vector<1x32xf32> to vector<8x32xf32>
    %23 = arith.mulf %20, %22 : vector<8x32xf32>
    %cst_11 = arith.constant dense<0.000000e+00> : vector<8xf32>
    %24 = vector.multi_reduction <add>, %23, %cst_11 [1] : vector<8x32xf32> to vector<8xf32>
    %25 = vector.shape_cast %24 : vector<8xf32> to vector<8x1xf32>
    %c0_12 = arith.constant 0 : index
    %c0_13 = arith.constant 0 : index
    %26 = vector.load %arg4[%c0_12, %c0_13] : memref<1x1xf32, #tpu.memory_space<vmem>>, vector<1x1xf32>
    %27 = vector.broadcast %26 : vector<1x1xf32> to vector<8x1xf32>
    %28 = arith.addf %25, %27 : vector<8x1xf32>
    %cst_14 = arith.constant 0.000000e+00 : f32
    %29 = vector.broadcast %cst_14 : f32 to vector<8x1xf32>
    %30 = arith.subf %29, %28 : vector<8x1xf32>
    %31 = math.exp %30 : vector<8x1xf32>
    %cst_15 = arith.constant 1.000000e+00 : f32
    %32 = vector.broadcast %cst_15 : f32 to vector<8x1xf32>
    %33 = arith.addf %32, %31 : vector<8x1xf32>
    %cst_16 = arith.constant 1.000000e+00 : f32
    %34 = vector.broadcast %cst_16 : f32 to vector<8x1xf32>
    %35 = arith.divf %34, %33 : vector<8x1xf32>
    %c0_17 = arith.constant 0 : index
    %c0_18 = arith.constant 0 : index
    %36 = vector.load %arg5[%c0_17, %c0_18] : memref<8x1xf32, #tpu.memory_space<vmem>>, vector<8x1xf32>
    tpu.vector_store %arg5[%c0_17, %c0_18], %35 {strides = array<i32>} : memref<8x1xf32, #tpu.memory_space<vmem>>, vector<8x1xf32>,
    return
  }
  func.func @transform_0(%arg0: i32) -> (i32, i32, i32) {
    %c0_i32 = arith.constant 0 : i32
    %c0_i32_0 = arith.constant 0 : i32
    %c0_i32_1 = arith.constant 0 : i32
    return %arg0, %c0_i32, %c0_i32_0 : i32, i32, i32
  }
  func.func @transform_1(%arg0: i32) -> (i32, i32) {
    %c0_i32 = arith.constant 0 : i32
    %c0_i32_0 = arith.constant 0 : i32
    return %arg0, %c0_i32 : i32, i32
  }
  func.func @transform_2(%arg0: i32) -> (i32, i32) {
    %c0_i32 = arith.constant 0 : i32
    %c0_i32_0 = arith.constant 0 : i32
    %c0_i32_1 = arith.constant 0 : i32
    return %c0_i32, %c0_i32_0 : i32, i32
  }
  func.func @transform_3(%arg0: i32) -> (i32, i32) {
    %c0_i32 = arith.constant 0 : i32
    %c0_i32_0 = arith.constant 0 : i32
    %c0_i32_1 = arith.constant 0 : i32
    return %c0_i32, %c0_i32_0 : i32, i32
  }
  func.func @transform_4(%arg0: i32) -> (i32, i32) {
    %c0_i32 = arith.constant 0 : i32
    %c0_i32_0 = arith.constant 0 : i32
    return %arg0, %c0_i32 : i32, i32
  }
}

</mosaic_0001>

<llo_original>
// kernel: tpu_custom_call.1
$region0: #{tpu_custom_call.1}
  #allocation0 [shape = 'u32[]', space=smem, size = 0x4, offset = 0x4, fixed_abs, tag = 'smem constant byte address 0x4 - core index']
  #allocation1 [shape = 'u32[144,128]{1,0:T(1,128)}', space=vmem, size = 0x12000, scoped, tag = 'internal scratch']
  #allocation2 [shape = 'f32[1,1]{1,0:T(1,128)S(1)}', space=vmem, size = 0x200, scoped, tag = 'scoped memory for tpu_custom_call.1']
  %s0 = inlined_call_operand.hbm [shape: f32[2,8,32], index: 0, kind: input, shape index: {}]
  %s1 = inlined_call_operand.vmem [shape: f32[8,1], index: 1, kind: input, shape index: {}]
  %s2 = inlined_call_operand.vmem [shape: f32[1,32], index: 2, kind: input, shape index: {}]
  %s3 = inlined_call_operand.<no memory space> [shape: f32[1,1], index: 3, kind: input, shape index: {}]
  %s4 = inlined_call_operand.vmem [shape: f32[8,1], index: 4, kind: output, shape index: {}]
  %s5 = sld [smem:[#allocation0]]
  $region30: #{tpu_custom_call.1} parent=0
    _
  %s7 = ssub.s32 1, %s5
  %s8 = scalar_select 0, %s7, %s5
  %v9 = vstv %s3
  %10 = vst [vmem:[#allocation2] sm:$0x1] %v9
  $region1: #{tpu_custom_call.1} parent=0
    #allocation3 [shape = 'u8[32768]{0}', space=vmem, size = 0x8000, scoped, tag = 'input window, operand 0, single buffered']
    #allocation4 [shape = 's32[1]{0}', space=sflag, size = 0x4, scoped, tag = 'scoped memory for tpu_custom_call.1']
    %11 = vsyncpa [#allocation4], 0
    // Predicated region
    $region2: #{tpu_custom_call.1} parent=1 // pred_check
      _
    $region3: #{tpu_custom_call.1} parent=1 // pred_check_branch
      %13 = sbr.rel (0) target = $region5
    $region4: #{tpu_custom_call.1} parent=1 // pred_region
      %s15 = ssub.s32 1024, 256
      %16 = vsyncadd [#allocation4], %s15
      %s17 = sshll.u32 [#allocation3], 4
      %s18 = int_to_ptr.vmem [resolvable:$true] %s17
      %23 = dma.hbm_to_vmem [thread:$0]  %s0, 256, %s18, [#allocation4], 128, 128, 8
    $region5: #{tpu_custom_call.1} parent=1 // pred_fallthru
      _
    // Predicated region
    $region6: #{tpu_custom_call.1} parent=1 // pred_check
      _
    $region7: #{tpu_custom_call.1} parent=1 // pred_check_branch
      %25 = sbr.rel (0) target = $region9
    $region8: #{tpu_custom_call.1} parent=1 // pred_region
      _
    $region9: #{tpu_custom_call.1} parent=1 // pred_fallthru
      _
    // Predicated region
    $region10: #{tpu_custom_call.1} parent=1 // pred_check
      _
    $region11: #{tpu_custom_call.1} parent=1 // pred_check_branch
      %27 = sbr.rel (0) target = $region13
    $region12: #{tpu_custom_call.1} parent=1 // pred_region
      _
    $region13: #{tpu_custom_call.1} parent=1 // pred_fallthru
      _
    // Predicated region
    $region14: #{tpu_custom_call.1} parent=1 // pred_check
      _
    $region15: #{tpu_custom_call.1} parent=1 // pred_check_branch
      %29 = sbr.rel (0) target = $region17
    $region16: #{tpu_custom_call.1} parent=1 // pred_region
      _
    $region17: #{tpu_custom_call.1} parent=1 // pred_fallthru
      _
    // Predicated region
    $region18: #{tpu_custom_call.1} parent=1 // pred_check
      _
    $region19: #{tpu_custom_call.1} parent=1 // pred_check_branch
      %31 = sbr.rel (0) target = $region21
    $region20: #{tpu_custom_call.1} parent=1 // pred_region
      %32 = dma.done [#allocation4], 1024
    $region21: #{tpu_custom_call.1} parent=1 // pred_fallthru
      _
    %v33 = vld [vmem:[#allocation3] sm:$0xff]
    %v34 = vld [vmem:[#allocation3 + $0x8] sm:$0xff]
    %v35 = vld [vmem:[#allocation3 + $0x10] sm:$0xff]
    %v36 = vld [vmem:[#allocation3 + $0x18] sm:$0xff]
    %v37 = vld [vmem:[#allocation3 + $0x20] sm:$0xff]
    %v38 = vld [vmem:[#allocation3 + $0x28] sm:$0xff]
    %v39 = vld [vmem:[#allocation3 + $0x30] sm:$0xff]
    %v40 = vld [vmem:[#allocation3 + $0x38] sm:$0xff]
    %vm41 = vcmask 261120
    %v42 = vsel %vm41, %v33, 0.0
    %v43 = vrot.slane %v42, 4
    %v44 = vadd.f32 %v42, %v43
    %v45 = vrot.slane %v44, 2
    %v46 = vadd.f32 %v44, %v45
    %v47 = vrot.slane %v46, 1
    %v48 = vadd.f32 %v46, %v47
    %v49 = vsel %vm41, %v34, 0.0
    %v50 = vrot.slane %v49, 4
    %v51 = vadd.f32 %v49, %v50
    %v52 = vrot.slane %v51, 2
    %v53 = vadd.f32 %v51, %v52
    %v54 = vrot.slane %v53, 1
    %v55 = vadd.f32 %v53, %v54
    %v56 = vsel %vm41, %v35, 0.0
    %v57 = vrot.slane %v56, 4
    %v58 = vadd.f32 %v56, %v57
    %v59 = vrot.slane %v58, 2
    %v60 = vadd.f32 %v58, %v59
    %v61 = vrot.slane %v60, 1
    %v62 = vadd.f32 %v60, %v61
    %v63 = vsel %vm41, %v36, 0.0
    %v64 = vrot.slane %v63, 4
    %v65 = vadd.f32 %v63, %v64
    %v66 = vrot.slane %v65, 2
    %v67 = vadd.f32 %v65, %v66
    %v68 = vrot.slane %v67, 1
    %v69 = vadd.f32 %v67, %v68
    %v70 = vsel %vm41, %v37, 0.0
    %v71 = vrot.slane %v70, 4
    %v72 = vadd.f32 %v70, %v71
    %v73 = vrot.slane %v72, 2
    %v74 = vadd.f32 %v72, %v73
    %v75 = vrot.slane %v74, 1
    %v76 = vadd.f32 %v74, %v75
    %v77 = vsel %vm41, %v38, 0.0
    %v78 = vrot.slane %v77, 4
    %v79 = vadd.f32 %v77, %v78
    %v80 = vrot.slane %v79, 2
    %v81 = vadd.f32 %v79, %v80
    %v82 = vrot.slane %v81, 1
    %v83 = vadd.f32 %v81, %v82
    %v84 = vsel %vm41, %v39, 0.0
    %v85 = vrot.slane %v84, 4
    %v86 = vadd.f32 %v84, %v85
    %v87 = vrot.slane %v86, 2
    %v88 = vadd.f32 %v86, %v87
    %v89 = vrot.slane %v88, 1
    %v90 = vadd.f32 %v88, %v89
    %v91 = vsel %vm41, %v40, 0.0
    %v92 = vrot.slane %v91, 4
    %v93 = vadd.f32 %v91, %v92
    %v94 = vrot.slane %v93, 2
    %v95 = vadd.f32 %v93, %v94
    %v96 = vrot.slane %v95, 1
    %v97 = vadd.f32 %v95, %v96
    %v98 = vld [vmem:[%s1] sm:$0xff]
    %100 = vset.pattern.permute.xlu0 0
    %101 = vperm.xlu0 %100, %v98
    %v102 = vpop.permute.xlu0 %101
    %v103 = vrot.slane %v102, 1
    %v104 = vrot.slane %v102, 2
    %v105 = vrot.slane %v102, 3
    %v106 = vrot.slane %v102, 4
    %v107 = vrot.slane %v102, 5
    %v108 = vrot.slane %v102, 6
    %v109 = vrot.slane %v102, 7
    %v118 = vrcp.pop %v102
    %v119 = vmul.f32 %v48, %v118
    %v120 = vrcp.pop %v103
    %v121 = vmul.f32 %v55, %v120
    %v122 = vrcp.pop %v104
    %v123 = vmul.f32 %v62, %v122
    %v124 = vrcp.pop %v105
    %v125 = vmul.f32 %v69, %v124
    %v126 = vrcp.pop %v106
    %v127 = vmul.f32 %v76, %v126
    %v128 = vrcp.pop %v107
    %v129 = vmul.f32 %v83, %v128
    %v130 = vrcp.pop %v108
    %v131 = vmul.f32 %v90, %v130
    %v132 = vrcp.pop %v109
    %v133 = vmul.f32 %v97, %v132
    %v142 = vrot.slane %v121, 7
    %vm143 = vcmask 1041409
    %v144 = vsel %vm143, %v142, %v119
    %v145 = vrot.slane %v123, 6
    %vm146 = vcmask 1042434
    %v147 = vsel %vm146, %v145, %v144
    %v148 = vrot.slane %v125, 5
    %vm149 = vcmask 1043459
    %v150 = vsel %vm149, %v148, %v147
    %v151 = vrot.slane %v127, 4
    %vm152 = vcmask 1044484
    %v153 = vsel %vm152, %v151, %v150
    %v154 = vrot.slane %v129, 3
    %vm155 = vcmask 1045509
    %v156 = vsel %vm155, %v154, %v153
    %v157 = vrot.slane %v131, 2
    %vm158 = vcmask 1046534
    %v159 = vsel %vm158, %v157, %v156
    %v160 = vrot.slane %v133, 1
    %vm161 = vcmask 1047559
    %v162 = vsel %vm161, %v160, %v159
    %v164 = vsel %vm41, %v162, 0.0
    %165 = vadd.xlane.f32.xlu0 %v164
    %v166 = vpop.xlane.xlu0 %165
    %v167 = vmul.f32 %v166, 0.03125
    %v169 = vrot.slane %v167, 1
    %v170 = vrot.slane %v167, 2
    %v171 = vrot.slane %v167, 3
    %v172 = vrot.slane %v167, 4
    %v173 = vrot.slane %v167, 5
    %v174 = vrot.slane %v167, 6
    %v175 = vrot.slane %v167, 7
    %v184 = vsub.f32 %v119, %v167
    %v185 = vsub.f32 %v121, %v169
    %v186 = vsub.f32 %v123, %v170
    %v187 = vsub.f32 %v125, %v171
    %v188 = vsub.f32 %v127, %v172
    %v189 = vsub.f32 %v129, %v173
    %v190 = vsub.f32 %v131, %v174
    %v191 = vsub.f32 %v133, %v175
    %v192 = vmul.f32 %v184, %v184
    %v193 = vmul.f32 %v185, %v185
    %v194 = vmul.f32 %v186, %v186
    %v195 = vmul.f32 %v187, %v187
    %v196 = vmul.f32 %v188, %v188
    %v197 = vmul.f32 %v189, %v189
    %v198 = vmul.f32 %v190, %v190
    %v199 = vmul.f32 %v191, %v191
    %v208 = vrot.slane %v193, 7
    %v209 = vsel %vm143, %v208, %v192
    %v210 = vrot.slane %v194, 6
    %v211 = vsel %vm146, %v210, %v209
    %v212 = vrot.slane %v195, 5
    %v213 = vsel %vm149, %v212, %v211
    %v214 = vrot.slane %v196, 4
    %v215 = vsel %vm152, %v214, %v213
    %v216 = vrot.slane %v197, 3
    %v217 = vsel %vm155, %v216, %v215
    %v218 = vrot.slane %v198, 2
    %v219 = vsel %vm158, %v218, %v217
    %v220 = vrot.slane %v199, 1
    %v221 = vsel %vm161, %v220, %v219
    %v223 = vsel %vm41, %v221, 0.0
    %224 = vadd.xlane.f32.xlu0 %v223
    %v225 = vpop.xlane.xlu0 %224
    %v226 = vmul.f32 %v225, 0.03125
    %v227 = vadd.f32 %v226, 1e-05
    %v228 = vrsqrt.pop %v227
    %v230 = vrot.slane %v228, 1
    %v231 = vrot.slane %v228, 2
    %v232 = vrot.slane %v228, 3
    %v233 = vrot.slane %v228, 4
    %v234 = vrot.slane %v228, 5
    %v235 = vrot.slane %v228, 6
    %v236 = vrot.slane %v228, 7
    %v245 = vmul.f32 %v184, %v228
    %v246 = vmul.f32 %v185, %v230
    %v247 = vmul.f32 %v186, %v231
    %v248 = vmul.f32 %v187, %v232
    %v249 = vmul.f32 %v188, %v233
    %v250 = vmul.f32 %v189, %v234
    %v251 = vmul.f32 %v190, %v235
    %v252 = vmul.f32 %v191, %v236
    %v253 = vld [vmem:[%s2] sm:$0x1]
    %v255 = vlaneseq
    %v256 = vshrl.u32 %v255, 7
    %v257 = vsub.s32 0, %v256
    %v258 = vrot.slane %v253, %v257
    %v260 = vmul.f32 %v245, %v258
    %v261 = vmul.f32 %v246, %v258
    %v262 = vmul.f32 %v247, %v258
    %v263 = vmul.f32 %v248, %v258
    %v264 = vmul.f32 %v249, %v258
    %v265 = vmul.f32 %v250, %v258
    %v266 = vmul.f32 %v251, %v258
    %v267 = vmul.f32 %v252, %v258
    %v276 = vrot.slane %v261, 7
    %v277 = vsel %vm143, %v276, %v260
    %v278 = vrot.slane %v262, 6
    %v279 = vsel %vm146, %v278, %v277
    %v280 = vrot.slane %v263, 5
    %v281 = vsel %vm149, %v280, %v279
    %v282 = vrot.slane %v264, 4
    %v283 = vsel %vm152, %v282, %v281
    %v284 = vrot.slane %v265, 3
    %v285 = vsel %vm155, %v284, %v283
    %v286 = vrot.slane %v266, 2
    %v287 = vsel %vm158, %v286, %v285
    %v288 = vrot.slane %v267, 1
    %v289 = vsel %vm161, %v288, %v287
    %v291 = vsel %vm41, %v289, 0.0
    %292 = vadd.xlane.f32.xlu0 %v291
    %v293 = vpop.xlane.xlu0 %292
    %v294 = vld [vmem:[#allocation2] sm:$0x1]
    %v296 = vlaneseq
    %v297 = vshrl.u32 %v296, 7
    %v298 = vsub.s32 0, %v297
    %v299 = vrot.slane %v294, %v298
    %v301 = vadd.f32 %v293, %v299
    %v302 = vsub.f32 0.0, %v301
    %v303 = vmul.f32 %v302, 1.442695
    %v304 = vpow.pop %v303
    %v305 = vadd.f32 %v304, 1.0
    %v306 = vrcp.pop %v305
    %v307 = vmul.f32 1.0, %v306
    %vm308 = vcmask 7168
    %309 = vst.msk [vmem:[%s4] sm:$0xff] %vm308, %v307
    // Predicated region
    $region22: #{tpu_custom_call.1} parent=1 // pred_check
      _
    $region23: #{tpu_custom_call.1} parent=1 // pred_check_branch
      %311 = sbr.rel (0) target = $region25
    $region24: #{tpu_custom_call.1} parent=1 // pred_region
      _
    $region25: #{tpu_custom_call.1} parent=1 // pred_fallthru
      _
    // Predicated region
    $region26: #{tpu_custom_call.1} parent=1 // pred_check
      _
    $region27: #{tpu_custom_call.1} parent=1 // pred_check_branch
      %313 = sbr.rel (0) target = $region29
    $region28: #{tpu_custom_call.1} parent=1 // pred_region
      _
    $region29: #{tpu_custom_call.1} parent=1 // pred_fallthru
      _
    %314 = vsyncpa [#allocation4], 1

</llo_original>
